<compile_context>
chip_gen: v7x
topology: tpu7x:2x2x1
jax: 0.10.0
libtpu: 0.0.40
codegen_flags: <defaults>
</compile_context>

<pallas_src>
import jax
import jax.numpy as jnp
from jax import lax
from jax.experimental import pallas as pl
from jax.experimental.pallas import tpu as pltpu

IN_FEATURES = 3      # ['Presupuesto', 'Ingresos', 'Calificacion_Promedio']
HIDDEN = 64
OUT_FEATURES = 1

LANE_CHUNK = 512     # inner chunk: (64, 512) f32 hidden chunk = 32 vregs, register-resident
MAX_TILE_B = 16384   # lanes per grid step; multiple of LANE_CHUNK; ~2 MiB VMEM footprint


def _round_up(v: int, m: int) -> int:
    return ((v + m - 1) // m) * m


def _pick_tile_b(batch: int) -> int:
    """Largest lane tile <= MAX_TILE_B (multiple of LANE_CHUNK).  For big batches
    keep >=2 grid steps so the "parallel" batch axis can feed both v7x TensorCores."""
    b = _round_up(max(batch, 1), LANE_CHUNK)
    if b <= MAX_TILE_B:
        return b
    return min(MAX_TILE_B, _round_up((b + 1) // 2, LANE_CHUNK))


def mlp_kernel(x_ref, w1_ref, neg_b1_ref, w2_ref, b2_ref, o_ref):
    """Fused MLP forward on one batch tile, batch on lanes.

    x_ref     : (IN_FEATURES, TILE_B)  VMEM  -- x^T tile (boundary lanes may be garbage)
    w1_ref    : (HIDDEN, IN_FEATURES)  VMEM  -- fc1.weight (out, in), grid-resident
    neg_b1_ref: (HIDDEN, 1)            VMEM  -- -fc1.bias (ReLU threshold)
    w2_ref    : (1, HIDDEN)            VMEM  -- fc2.weight row
    b2_ref    : (1, 1)                 SMEM  -- b2 + w2 @ b1 (folded scalar)
    o_ref     : (1, TILE_B)            VMEM  -- lane-dense output row
    """
    tile_b = o_ref.shape[-1]
    num_chunks = tile_b // LANE_CHUNK

    # Hoist the tiny weight loads out of the chunk loop.
    w1 = w1_ref[...]            # (64, 3)
    neg_b1 = neg_b1_ref[...]    # (64, 1), broadcast inside jnp.maximum
    w2 = w2_ref[...]            # (1, 64)
    b2_eff = b2_ref[0, 0]       # scalar

    def chunk(c, carry):
        off = pl.multiple_of(c * LANE_CHUNK, LANE_CHUNK)
        xc = x_ref[:, pl.ds(off, LANE_CHUNK)]                        # (3, C)
        # fc1 on the MXU; ReLU with folded bias is a single VPU max.
        pre = jnp.dot(w1, xc, preferred_element_type=jnp.float32)    # (64, C)
        h = jnp.maximum(pre, neg_b1)                                 # == relu(pre + b1) - b1
        # fc2 on the MXU (K=64 contraction); only the folded scalar add stays on the VPU.
        y = jnp.dot(w2, h, preferred_element_type=jnp.float32)       # (1, C)
        o_ref[:, pl.ds(off, LANE_CHUNK)] = (y + b2_eff).astype(o_ref.dtype)
        return carry

    lax.fori_loop(0, num_chunks, chunk, 0, unroll=True)


def red_neuronal_forward_feature_major(x_t, w1, b1, w2, b2):
    """Forward pass with x given feature-major: x_t has shape (IN_FEATURES, B).

    Computes relu(x @ w1.T + b1) @ w2.T + b2 for x = x_t.T; returns (B, 1) f32.
    """
    assert x_t.shape[0] == IN_FEATURES
    batch = x_t.shape[1]
    tile_b = _pick_tile_b(batch)
    num_tiles = pl.cdiv(batch, tile_b)
    b_pad = num_tiles * tile_b

    x_t = x_t.astype(jnp.float32)
    w1 = w1.astype(jnp.float32)                                      # (64, 3)
    neg_b1 = (-b1).reshape(HIDDEN, 1).astype(jnp.float32)            # (64, 1)
    w2_row = w2.reshape(OUT_FEATURES, HIDDEN).astype(jnp.float32)    # (1, 64)
    # Fold the fc1-bias contribution into fc2's bias: b2_eff = b2 + w2 @ b1
    # (computed as an exact f32 mul+sum, no matmul-precision dependence).
    b2_eff = (b2.reshape(1, 1).astype(jnp.float32)
              + jnp.sum(w2_row * b1.reshape(1, HIDDEN).astype(jnp.float32),
                        axis=1, keepdims=True))                      # (1, 1)

    out = pl.pallas_call(
        mlp_kernel,
        out_shape=jax.ShapeDtypeStruct((1, b_pad), jnp.float32),
        grid=(num_tiles,),
        in_specs=[
            pl.BlockSpec((IN_FEATURES, tile_b), lambda i: (0, i)),   # x^T tile, pipelined
            pl.BlockSpec((HIDDEN, IN_FEATURES), lambda i: (0, 0)),   # weights stay VMEM-resident
            pl.BlockSpec((HIDDEN, 1), lambda i: (0, 0)),
            pl.BlockSpec((OUT_FEATURES, HIDDEN), lambda i: (0, 0)),
            pl.BlockSpec(memory_space=pltpu.MemorySpace.SMEM),       # folded bias scalar
        ],
        out_specs=pl.BlockSpec((1, tile_b), lambda i: (0, i)),       # lane-dense output row
        compiler_params=pltpu.CompilerParams(
            dimension_semantics=("parallel",),   # megacore sharding of the batch axis on v7x
        ),
    )(x_t, w1, neg_b1, w2_row, b2_eff)

    # (1, b_pad) -> drop padded lanes -> (B, 1)
    return out[0, :batch].reshape(batch, OUT_FEATURES)


def red_neuronal_forward(x, w1, b1, w2, b2):
    """PyTorch-layout entry point: x is (B, IN_FEATURES), weights in nn.Linear layout.

    The transpose below is one extra HBM pass over x; callers that already hold x
    feature-major should call red_neuronal_forward_feature_major directly.
    """
    return red_neuronal_forward_feature_major(jnp.transpose(x), w1, b1, w2, b2)


def init_params(key):
    """Deterministic init mimicking torch.nn.Linear default U(-1/sqrt(fan_in), 1/sqrt(fan_in))."""
    k1, k2, k3, k4 = jax.random.split(key, 4)
    bound1 = 1.0 / jnp.sqrt(float(IN_FEATURES))
    bound2 = 1.0 / jnp.sqrt(float(HIDDEN))
    w1 = jax.random.uniform(k1, (HIDDEN, IN_FEATURES), jnp.float32, -bound1, bound1)
    b1 = jax.random.uniform(k2, (HIDDEN,), jnp.float32, -bound1, bound1)
    w2 = jax.random.uniform(k3, (OUT_FEATURES, HIDDEN), jnp.float32, -bound2, bound2)
    b2 = jax.random.uniform(k4, (OUT_FEATURES,), jnp.float32, -bound2, bound2)
    return w1, b1, w2, b2


if __name__ == "__main__":
    key = jax.random.PRNGKey(0)
    k_x, k_p = jax.random.split(key)
    w1, b1, w2, b2 = init_params(k_p)

    def reference(x):
        # f32-accurate reference (HIGHEST precision avoids TPU default low-precision matmul).
        h = jnp.maximum(jnp.matmul(x, w1.T, precision=lax.Precision.HIGHEST) + b1, 0.0)
        return jnp.matmul(h, w2.T, precision=lax.Precision.HIGHEST) + b2

    # Small case (single chunk) + a multi-chunk case with a ragged tail.
    for batch in (8, 1300):
        x = jax.random.normal(jax.random.fold_in(k_x, batch),
                              (batch, IN_FEATURES), jnp.float32)
        out = jax.block_until_ready(red_neuronal_forward(x, w1, b1, w2, b2))
        ref = reference(x)
        assert out.shape == (batch, OUT_FEATURES)
        assert jnp.allclose(out, ref, atol=5e-3, rtol=5e-3), f"mismatch at batch={batch}"

    print("KERNEL_OK")
</pallas_src>

<mosaic_0001>
module attributes {stable_mosaic.version = 11 : i64} {
  func.func @mlp_kernel(%arg0: i32, %arg1: memref<3x512xf32, #tpu.memory_space<vmem>>, %arg2: memref<64x3xf32, #tpu.memory_space<vmem>>, %arg3: memref<64x1xf32, #tpu.memory_space<vmem>>, %arg4: memref<1x64xf32, #tpu.memory_space<vmem>>, %arg5: memref<1x1xf32, #tpu.memory_space<smem>>, %arg6: memref<1x512xf32, #tpu.memory_space<vmem>>) attributes {dimension_semantics = [#tpu.dimension_semantics<parallel>], iteration_bounds = array<i64: 1>, scalar_prefetch = 0 : i64, scratch_operands = 0 : i64, tpu.core_type = #tpu.core_type<tc>, window_params = [{transform_indices = @transform_0, window_bounds = array<i64: 3, 512>}, {pipeline_mode = #tpu.pipeline_mode<synchronous>, transform_indices = @transform_1, window_bounds = array<i64: 64, 3>}, {pipeline_mode = #tpu.pipeline_mode<synchronous>, transform_indices = @transform_2, window_bounds = array<i64: 64, 1>}, {pipeline_mode = #tpu.pipeline_mode<synchronous>, transform_indices = @transform_3, window_bounds = array<i64: 1, 64>}, {transform_indices = @transform_4, window_bounds = array<i64: 1, 1>}, {transform_indices = @transform_5, window_bounds = array<i64: 1, 512>}]} {
    %c0 = arith.constant 0 : index
    %c0_0 = arith.constant 0 : index
    %0 = vector.load %arg2[%c0, %c0_0] : memref<64x3xf32, #tpu.memory_space<vmem>>, vector<64x3xf32>
    %c0_1 = arith.constant 0 : index
    %c0_2 = arith.constant 0 : index
    %1 = vector.load %arg3[%c0_1, %c0_2] : memref<64x1xf32, #tpu.memory_space<vmem>>, vector<64x1xf32>
    %c0_3 = arith.constant 0 : index
    %c0_4 = arith.constant 0 : index
    %2 = vector.load %arg4[%c0_3, %c0_4] : memref<1x64xf32, #tpu.memory_space<vmem>>, vector<1x64xf32>
    %c0_5 = arith.constant 0 : index
    %c0_6 = arith.constant 0 : index
    %3 = memref.load %arg5[%c0_5, %c0_6] : memref<1x1xf32, #tpu.memory_space<smem>>
    %c0_i32 = arith.constant 0 : i32
    %c512_i32 = arith.constant 512 : i32
    %4 = arith.muli %c0_i32, %c512_i32 : i32
    %5 = tpu.assume_multiple %4, 512 : i32
    %c0_7 = arith.constant 0 : index
    %6 = arith.index_cast %5 : i32 to index
    %7 = vector.load %arg1[%c0_7, %6] : memref<3x512xf32, #tpu.memory_space<vmem>>, vector<3x512xf32>
    %cst = arith.constant dense<0.000000e+00> : vector<64x512xf32>
    %8 = tpu.matmul %0, %7, %cst {dimension_numbers = #tpu.dot_dimension_numbers<[1], [0], [0], [1], [0, 0, 1, 1], [], []>} : vector<64x3xf32>, vector<3x512xf32>, vector<64x512xf32> -> vector<64x512xf32>
    %9 = vector.broadcast %1 : vector<64x1xf32> to vector<64x512xf32>
    %10 = arith.maximumf %8, %9 : vector<64x512xf32>
    %cst_8 = arith.constant dense<0.000000e+00> : vector<1x512xf32>
    %11 = tpu.matmul %2, %10, %cst_8 {dimension_numbers = #tpu.dot_dimension_numbers<[1], [0], [0], [1], [0, 0, 1, 1], [], []>} : vector<1x64xf32>, vector<64x512xf32>, vector<1x512xf32> -> vector<1x512xf32>
    %12 = vector.broadcast %3 : f32 to vector<1x512xf32>
    %13 = arith.addf %11, %12 : vector<1x512xf32>
    %c0_9 = arith.constant 0 : index
    %14 = arith.index_cast %5 : i32 to index
    %15 = vector.load %arg6[%c0_9, %14] : memref<1x512xf32, #tpu.memory_space<vmem>>, vector<1x512xf32>
    tpu.vector_store %arg6[%c0_9, %14], %13 {strides = array<i32>} : memref<1x512xf32, #tpu.memory_space<vmem>>, vector<1x512xf32>,
    %c1_i32 = arith.constant 1 : i32
    return
  }
  func.func @transform_0(%arg0: i32) -> (i32, i32) {
    %c0_i32 = arith.constant 0 : i32
    %c0_i32_0 = arith.constant 0 : i32
    return %c0_i32, %arg0 : i32, i32
  }
  func.func @transform_1(%arg0: i32) -> (i32, i32) {
    %c0_i32 = arith.constant 0 : i32
    %c0_i32_0 = arith.constant 0 : i32
    %c0_i32_1 = arith.constant 0 : i32
    return %c0_i32, %c0_i32_0 : i32, i32
  }
  func.func @transform_2(%arg0: i32) -> (i32, i32) {
    %c0_i32 = arith.constant 0 : i32
    %c0_i32_0 = arith.constant 0 : i32
    %c0_i32_1 = arith.constant 0 : i32
    return %c0_i32, %c0_i32_0 : i32, i32
  }
  func.func @transform_3(%arg0: i32) -> (i32, i32) {
    %c0_i32 = arith.constant 0 : i32
    %c0_i32_0 = arith.constant 0 : i32
    %c0_i32_1 = arith.constant 0 : i32
    return %c0_i32, %c0_i32_0 : i32, i32
  }
  func.func @transform_4(%arg0: i32) -> (i32, i32) {
    %c0_i32 = arith.constant 0 : i32
    %c0_i32_0 = arith.constant 0 : i32
    %c0_i32_1 = arith.constant 0 : i32
    return %c0_i32, %c0_i32_0 : i32, i32
  }
  func.func @transform_5(%arg0: i32) -> (i32, i32) {
    %c0_i32 = arith.constant 0 : i32
    %c0_i32_0 = arith.constant 0 : i32
    return %c0_i32, %arg0 : i32, i32
  }
}

</mosaic_0001>

<llo_original>
// kernel: tpu_custom_call.1
$region0: #{tpu_custom_call.1}
  #allocation0 [shape = 'u32[]', space=smem, size = 0x4, offset = 0x4, fixed_abs, tag = 'smem constant byte address 0x4 - core index']
  #allocation1 [shape = 'u32[144,128]{1,0:T(1,128)}', space=vmem, size = 0x12000, scoped, tag = 'internal scratch']
  #allocation2 [shape = 'f32[1,1]{1,0:T(1,128)S(6)}', space=smem, size = 0x200, scoped, tag = 'scoped memory for tpu_custom_call.1']
  %s0 = inlined_call_operand.vmem [shape: f32[3,8], index: 0, kind: input, shape index: {}]
  %s1 = inlined_call_operand.vmem [shape: f32[64,3], index: 1, kind: input, shape index: {}]
  %s2 = inlined_call_operand.vmem [shape: f32[64,1], index: 2, kind: input, shape index: {}]
  %s3 = inlined_call_operand.vmem [shape: f32[1,64], index: 3, kind: input, shape index: {}]
  %s4 = inlined_call_operand.<no memory space> [shape: f32[1,1], index: 4, kind: input, shape index: {}]
  %s5 = inlined_call_operand.hbm [shape: f32[1,512], index: 5, kind: output, shape index: {}]
  %s6 = sld [smem:[#allocation0]]
  $region30: #{tpu_custom_call.1} parent=0
    _
  %s8 = ssub.s32 1, %s6
  %s9 = scalar_select 0, %s8, %s6
  %10 = sst [smem:[#allocation2]] %s4
  $region1: #{tpu_custom_call.1} parent=0
    #allocation3 [shape = 'u8[2048]{0}', space=vmem, size = 0x800, scoped, tag = 'output window, operand 0, single buffered']
    #allocation4 [shape = 's32[1]{0}', space=sflag, size = 0x4, scoped, tag = 'scoped memory for tpu_custom_call.1']
    %11 = vsyncpa [#allocation4], 0
    // Predicated region
    $region2: #{tpu_custom_call.1} parent=1 // pred_check
      _
    $region3: #{tpu_custom_call.1} parent=1 // pred_check_branch
      %13 = sbr.rel (0) target = $region5
    $region4: #{tpu_custom_call.1} parent=1 // pred_region
      _
    $region5: #{tpu_custom_call.1} parent=1 // pred_fallthru
      _
    // Predicated region
    $region6: #{tpu_custom_call.1} parent=1 // pred_check
      _
    $region7: #{tpu_custom_call.1} parent=1 // pred_check_branch
      %15 = sbr.rel (0) target = $region9
    $region8: #{tpu_custom_call.1} parent=1 // pred_region
      _
    $region9: #{tpu_custom_call.1} parent=1 // pred_fallthru
      _
    // Predicated region
    $region10: #{tpu_custom_call.1} parent=1 // pred_check
      _
    $region11: #{tpu_custom_call.1} parent=1 // pred_check_branch
      %17 = sbr.rel (0) target = $region13
    $region12: #{tpu_custom_call.1} parent=1 // pred_region
      _
    $region13: #{tpu_custom_call.1} parent=1 // pred_fallthru
      _
    // Predicated region
    $region14: #{tpu_custom_call.1} parent=1 // pred_check
      _
    $region15: #{tpu_custom_call.1} parent=1 // pred_check_branch
      %19 = sbr.rel (0) target = $region17
    $region16: #{tpu_custom_call.1} parent=1 // pred_region
      _
    $region17: #{tpu_custom_call.1} parent=1 // pred_fallthru
      _
    // Predicated region
    $region18: #{tpu_custom_call.1} parent=1 // pred_check
      _
    $region19: #{tpu_custom_call.1} parent=1 // pred_check_branch
      %21 = sbr.rel (0) target = $region21
    $region20: #{tpu_custom_call.1} parent=1 // pred_region
      _
    $region21: #{tpu_custom_call.1} parent=1 // pred_fallthru
      _
    %v22 = vld [vmem:[%s1] sm:$0xff]
    %v23 = vld [vmem:[%s1 + $0x8] sm:$0xff]
    %v24 = vld [vmem:[%s1 + $0x10] sm:$0xff]
    %v25 = vld [vmem:[%s1 + $0x18] sm:$0xff]
    %v26 = vld [vmem:[%s1 + $0x20] sm:$0xff]
    %v27 = vld [vmem:[%s1 + $0x28] sm:$0xff]
    %v28 = vld [vmem:[%s1 + $0x30] sm:$0xff]
    %v29 = vld [vmem:[%s1 + $0x38] sm:$0xff]
    %v30 = vld [vmem:[%s2] sm:$0xff]
    %v31 = vld [vmem:[%s2 + $0x8] sm:$0xff]
    %v32 = vld [vmem:[%s2 + $0x10] sm:$0xff]
    %v33 = vld [vmem:[%s2 + $0x18] sm:$0xff]
    %v34 = vld [vmem:[%s2 + $0x20] sm:$0xff]
    %v35 = vld [vmem:[%s2 + $0x28] sm:$0xff]
    %v36 = vld [vmem:[%s2 + $0x30] sm:$0xff]
    %v37 = vld [vmem:[%s2 + $0x38] sm:$0xff]
    %v38 = vld [vmem:[%s3] sm:$0x1]
    %s39 = sld [smem:[#allocation2]]
    %v40 = vld [vmem:[%s0] sm:$0x77]
    %v41 = vld [vmem:[%s0 + $0x8] sm:$0x77]
    %v44 = vcombine.high %v40, %v40
    %v45 = vcombine.high %v41, %v41
    %vm46 = vcmask 23552
    %v48 = vsel %vm46, %v22, 0
    %v51 = vsel %vm46, %v23, 0
    %v54 = vsel %vm46, %v24, 0
    %v57 = vsel %vm46, %v25, 0
    %v60 = vsel %vm46, %v26, 0
    %v63 = vsel %vm46, %v27, 0
    %v66 = vsel %vm46, %v28, 0
    %v69 = vsel %vm46, %v29, 0
    %vm71 = vcmask 1042432
    %v72 = vsel %vm71, %v40, 0
    %v74 = vsel %vm71, %v44, 0
    %v76 = vsel %vm71, %v41, 0
    %v78 = vsel %vm71, %v45, 0
    %80 = vmatprep.subr.mxu0 %v74
    %81 = vmatpush1.msra.mxu0 %v72
    %82 = vmatprep.subr.mxu0 0.0
    %83 = vmatpush1.msra.mxu0 0.0
    %84 = vmatprep.subr.mxu0 0.0
    %85 = vmatpush1.msra.mxu0 0.0
    %86 = vmatprep.subr.mxu0 0.0
    %87 = vmatpush1.msra.mxu0 0.0
    %88 = vmatprep.subr.mxu0 0.0
    %89 = vmatpush1.msra.mxu0 0.0
    %90 = vmatprep.subr.mxu0 0.0
    %91 = vmatpush1.msra.mxu0 0.0
    %92 = vmatprep.subr.mxu0 0.0
    %93 = vmatpush1.msra.mxu0 0.0
    %94 = vmatprep.subr.mxu0 0.0
    %95 = vmatpush1.msra.mxu0 0.0
    %96 = vmatprep.subr.mxu0 0.0
    %97 = vmatpush1.msra.mxu0 0.0
    %98 = vmatprep.subr.mxu0 0.0
    %99 = vmatpush1.msra.mxu0 0.0
    %100 = vmatprep.subr.mxu0 0.0
    %101 = vmatpush1.msra.mxu0 0.0
    %102 = vmatprep.subr.mxu0 0.0
    %103 = vmatpush1.msra.mxu0 0.0
    %104 = vmatprep.subr.mxu0 0.0
    %105 = vmatpush1.msra.mxu0 0.0
    %106 = vmatprep.subr.mxu0 0.0
    %107 = vmatpush1.msra.mxu0 0.0
    %108 = vmatprep.subr.mxu0 0.0
    %109 = vmatpush1.msra.mxu0 0.0
    %110 = vmatprep.subr.mxu0 0.0
    %111 = vmatpush1.msra.mxu0 0.0
    %112 = vmatprep.subr.mxu0 0.0
    %113 = vmatpush1.msra.mxu0 0.0
    %114 = vmatprep.subr.mxu0 0.0
    %115 = vmatpush1.msra.mxu0 0.0
    %116 = vmatprep.subr.mxu0 0.0
    %117 = vmatpush1.msra.mxu0 0.0
    %118 = vmatprep.subr.mxu0 0.0
    %119 = vmatpush1.msra.mxu0 0.0
    %120 = vmatprep.subr.mxu0 0.0
    %121 = vmatpush1.msra.mxu0 0.0
    %122 = vmatprep.subr.mxu0 0.0
    %123 = vmatpush1.msra.mxu0 0.0
    %124 = vmatprep.subr.mxu0 0.0
    %125 = vmatpush1.msra.mxu0 0.0
    %126 = vmatprep.subr.mxu0 0.0
    %127 = vmatpush1.msra.mxu0 0.0
    %128 = vmatprep.subr.mxu0 0.0
    %129 = vmatpush1.msra.mxu0 0.0
    %130 = vmatprep.subr.mxu0 0.0
    %131 = vmatpush1.msra.mxu0 0.0
    %132 = vmatprep.subr.mxu0 0.0
    %133 = vmatpush1.msra.mxu0 0.0
    %134 = vmatprep.subr.mxu0 0.0
    %135 = vmatpush1.msra.mxu0 0.0
    %136 = vmatprep.subr.mxu0 0.0
    %137 = vmatpush1.msra.mxu0 0.0
    %138 = vmatprep.subr.mxu0 0.0
    %139 = vmatpush1.msra.mxu0 0.0
    %140 = vmatprep.subr.mxu0 0.0
    %141 = vmatpush1.msra.mxu0 0.0
    %142 = vmatprep.subr.mxu0 0.0
    %143 = vmatpush1.msra.mxu0 0.0
    %144 = vmatprep.mubr.f32.mxu0 0.0
    %145 = vmatmul.mubr.f32.gmra.mrb[0].mxu0 %v48
    %v146 = vpop.f32.mrb[0].mxu0
    %v147 = vadd.f32 0.0, %v146
    %v148 = vpop.f32.mrb[0].mxu0
    %v149 = vadd.f32 0.0, %v148
    %150 = vmatprep.mubr.f32.mxu0 0.0
    %151 = vmatmul.mubr.f32.gmra.mrb[0].mxu0 %v51
    %v152 = vpop.f32.mrb[0].mxu0
    %v153 = vadd.f32 0.0, %v152
    %v154 = vpop.f32.mrb[0].mxu0
    %v155 = vadd.f32 0.0, %v154
    %156 = vmatprep.mubr.f32.mxu0 0.0
    %157 = vmatmul.mubr.f32.gmra.mrb[0].mxu0 %v54
    %v158 = vpop.f32.mrb[0].mxu0
    %v159 = vadd.f32 0.0, %v158
    %v160 = vpop.f32.mrb[0].mxu0
    %v161 = vadd.f32 0.0, %v160
    %162 = vmatprep.mubr.f32.mxu0 0.0
    %163 = vmatmul.mubr.f32.gmra.mrb[0].mxu0 %v57
    %v164 = vpop.f32.mrb[0].mxu0
    %v165 = vadd.f32 0.0, %v164
    %v166 = vpop.f32.mrb[0].mxu0
    %v167 = vadd.f32 0.0, %v166
    %168 = vmatprep.mubr.f32.mxu0 0.0
    %169 = vmatmul.mubr.f32.gmra.mrb[0].mxu0 %v60
    %v170 = vpop.f32.mrb[0].mxu0
    %v171 = vadd.f32 0.0, %v170
    %v172 = vpop.f32.mrb[0].mxu0
    %v173 = vadd.f32 0.0, %v172
    %174 = vmatprep.mubr.f32.mxu0 0.0
    %175 = vmatmul.mubr.f32.gmra.mrb[0].mxu0 %v63
    %v176 = vpop.f32.mrb[0].mxu0
    %v177 = vadd.f32 0.0, %v176
    %v178 = vpop.f32.mrb[0].mxu0
    %v179 = vadd.f32 0.0, %v178
    %180 = vmatprep.mubr.f32.mxu0 0.0
    %181 = vmatmul.mubr.f32.gmra.mrb[0].mxu0 %v66
    %v182 = vpop.f32.mrb[0].mxu0
    %v183 = vadd.f32 0.0, %v182
    %v184 = vpop.f32.mrb[0].mxu0
    %v185 = vadd.f32 0.0, %v184
    %186 = vmatprep.mubr.f32.mxu0 0.0
    %187 = vmatmul.mubr.f32.gmra.mrb[0].mxu0 %v69
    %v188 = vpop.f32.mrb[0].mxu0
    %v189 = vadd.f32 0.0, %v188
    %v190 = vpop.f32.mrb[0].mxu0
    %v191 = vadd.f32 0.0, %v190
    %192 = vdwg.mxu0
    %193 = vmatprep.subr.mxu0 %v78
    %194 = vmatpush1.msra.mxu0 %v76
    %195 = vmatprep.subr.mxu0 0.0
    %196 = vmatpush1.msra.mxu0 0.0
    %197 = vmatprep.subr.mxu0 0.0
    %198 = vmatpush1.msra.mxu0 0.0
    %199 = vmatprep.subr.mxu0 0.0
    %200 = vmatpush1.msra.mxu0 0.0
    %201 = vmatprep.subr.mxu0 0.0
    %202 = vmatpush1.msra.mxu0 0.0
    %203 = vmatprep.subr.mxu0 0.0
    %204 = vmatpush1.msra.mxu0 0.0
    %205 = vmatprep.subr.mxu0 0.0
    %206 = vmatpush1.msra.mxu0 0.0
    %207 = vmatprep.subr.mxu0 0.0
    %208 = vmatpush1.msra.mxu0 0.0
    %209 = vmatprep.subr.mxu0 0.0
    %210 = vmatpush1.msra.mxu0 0.0
    %211 = vmatprep.subr.mxu0 0.0
    %212 = vmatpush1.msra.mxu0 0.0
    %213 = vmatprep.subr.mxu0 0.0
    %214 = vmatpush1.msra.mxu0 0.0
    %215 = vmatprep.subr.mxu0 0.0
    %216 = vmatpush1.msra.mxu0 0.0
    %217 = vmatprep.subr.mxu0 0.0
    %218 = vmatpush1.msra.mxu0 0.0
    %219 = vmatprep.subr.mxu0 0.0
    %220 = vmatpush1.msra.mxu0 0.0
    %221 = vmatprep.subr.mxu0 0.0
    %222 = vmatpush1.msra.mxu0 0.0
    %223 = vmatprep.subr.mxu0 0.0
    %224 = vmatpush1.msra.mxu0 0.0
    %225 = vmatprep.subr.mxu0 0.0
    %226 = vmatpush1.msra.mxu0 0.0
    %227 = vmatprep.subr.mxu0 0.0
    %228 = vmatpush1.msra.mxu0 0.0
    %229 = vmatprep.subr.mxu0 0.0
    %230 = vmatpush1.msra.mxu0 0.0
    %231 = vmatprep.subr.mxu0 0.0
    %232 = vmatpush1.msra.mxu0 0.0
    %233 = vmatprep.subr.mxu0 0.0
    %234 = vmatpush1.msra.mxu0 0.0
    %235 = vmatprep.subr.mxu0 0.0
    %236 = vmatpush1.msra.mxu0 0.0
    %237 = vmatprep.subr.mxu0 0.0
    %238 = vmatpush1.msra.mxu0 0.0
    %239 = vmatprep.subr.mxu0 0.0
    %240 = vmatpush1.msra.mxu0 0.0
    %241 = vmatprep.subr.mxu0 0.0
    %242 = vmatpush1.msra.mxu0 0.0
    %243 = vmatprep.subr.mxu0 0.0
    %244 = vmatpush1.msra.mxu0 0.0
    %245 = vmatprep.subr.mxu0 0.0
    %246 = vmatpush1.msra.mxu0 0.0
    %247 = vmatprep.subr.mxu0 0.0
    %248 = vmatpush1.msra.mxu0 0.0
    %249 = vmatprep.subr.mxu0 0.0
    %250 = vmatpush1.msra.mxu0 0.0
    %251 = vmatprep.subr.mxu0 0.0
    %252 = vmatpush1.msra.mxu0 0.0
    %253 = vmatprep.subr.mxu0 0.0
    %254 = vmatpush1.msra.mxu0 0.0
    %255 = vmatprep.subr.mxu0 0.0
    %256 = vmatpush1.msra.mxu0 0.0
    %257 = vmatprep.mubr.f32.mxu0 0.0
    %258 = vmatmul.mubr.f32.gmra.mrb[0].mxu0 %v48
    %v259 = vpop.f32.mrb[0].mxu0
    %v260 = vadd.f32 0.0, %v259
    %v261 = vpop.f32.mrb[0].mxu0
    %v262 = vadd.f32 0.0, %v261
    %263 = vmatprep.mubr.f32.mxu0 0.0
    %264 = vmatmul.mubr.f32.gmra.mrb[0].mxu0 %v51
    %v265 = vpop.f32.mrb[0].mxu0
    %v266 = vadd.f32 0.0, %v265
    %v267 = vpop.f32.mrb[0].mxu0
    %v268 = vadd.f32 0.0, %v267
    %269 = vmatprep.mubr.f32.mxu0 0.0
    %270 = vmatmul.mubr.f32.gmra.mrb[0].mxu0 %v54
    %v271 = vpop.f32.mrb[0].mxu0
    %v272 = vadd.f32 0.0, %v271
    %v273 = vpop.f32.mrb[0].mxu0
    %v274 = vadd.f32 0.0, %v273
    %275 = vmatprep.mubr.f32.mxu0 0.0
    %276 = vmatmul.mubr.f32.gmra.mrb[0].mxu0 %v57
    %v277 = vpop.f32.mrb[0].mxu0
    %v278 = vadd.f32 0.0, %v277
    %v279 = vpop.f32.mrb[0].mxu0
    %v280 = vadd.f32 0.0, %v279
    %281 = vmatprep.mubr.f32.mxu0 0.0
    %282 = vmatmul.mubr.f32.gmra.mrb[0].mxu0 %v60
    %v283 = vpop.f32.mrb[0].mxu0
    %v284 = vadd.f32 0.0, %v283
    %v285 = vpop.f32.mrb[0].mxu0
    %v286 = vadd.f32 0.0, %v285
    %287 = vmatprep.mubr.f32.mxu0 0.0
    %288 = vmatmul.mubr.f32.gmra.mrb[0].mxu0 %v63
    %v289 = vpop.f32.mrb[0].mxu0
    %v290 = vadd.f32 0.0, %v289
    %v291 = vpop.f32.mrb[0].mxu0
    %v292 = vadd.f32 0.0, %v291
    %293 = vmatprep.mubr.f32.mxu0 0.0
    %294 = vmatmul.mubr.f32.gmra.mrb[0].mxu0 %v66
    %v295 = vpop.f32.mrb[0].mxu0
    %v296 = vadd.f32 0.0, %v295
    %v297 = vpop.f32.mrb[0].mxu0
    %v298 = vadd.f32 0.0, %v297
    %299 = vmatprep.mubr.f32.mxu0 0.0
    %300 = vmatmul.mubr.f32.gmra.mrb[0].mxu0 %v69
    %v301 = vpop.f32.mrb[0].mxu0
    %v302 = vadd.f32 0.0, %v301
    %v303 = vpop.f32.mrb[0].mxu0
    %v304 = vadd.f32 0.0, %v303
    %305 = vdwg.mxu0
    %307 = vset.pattern.permute.xlu0 0
    %308 = vperm.xlu0 %307, %v30
    %v309 = vpop.permute.xlu0 %308
    %312 = vset.pattern.permute.xlu0 0
    %313 = vperm.xlu0 %312, %v31
    %v314 = vpop.permute.xlu0 %313
    %317 = vset.pattern.permute.xlu0 0
    %318 = vperm.xlu0 %317, %v32
    %v319 = vpop.permute.xlu0 %318
    %322 = vset.pattern.permute.xlu0 0
    %323 = vperm.xlu0 %322, %v33
    %v324 = vpop.permute.xlu0 %323
    %327 = vset.pattern.permute.xlu0 0
    %328 = vperm.xlu0 %327, %v34
    %v329 = vpop.permute.xlu0 %328
    %332 = vset.pattern.permute.xlu0 0
    %333 = vperm.xlu0 %332, %v35
    %v334 = vpop.permute.xlu0 %333
    %337 = vset.pattern.permute.xlu0 0
    %338 = vperm.xlu0 %337, %v36
    %v339 = vpop.permute.xlu0 %338
    %342 = vset.pattern.permute.xlu0 0
    %343 = vperm.xlu0 %342, %v37
    %v344 = vpop.permute.xlu0 %343
    %v346 = vmax.f32 %v147, %v309
    %v347 = vmax.f32 %v149, %v309
    %v348 = vmax.f32 %v260, %v309
    %v349 = vmax.f32 %v262, %v309
    %v350 = vmax.f32 %v153, %v314
    %v351 = vmax.f32 %v155, %v314
    %v352 = vmax.f32 %v266, %v314
    %v353 = vmax.f32 %v268, %v314
    %v354 = vmax.f32 %v159, %v319
    %v355 = vmax.f32 %v161, %v319
    %v356 = vmax.f32 %v272, %v319
    %v357 = vmax.f32 %v274, %v319
    %v358 = vmax.f32 %v165, %v324
    %v359 = vmax.f32 %v167, %v324
    %v360 = vmax.f32 %v278, %v324
    %v361 = vmax.f32 %v280, %v324
    %v362 = vmax.f32 %v171, %v329
    %v363 = vmax.f32 %v173, %v329
    %v364 = vmax.f32 %v284, %v329
    %v365 = vmax.f32 %v286, %v329
    %v366 = vmax.f32 %v177, %v334
    %v367 = vmax.f32 %v179, %v334
    %v368 = vmax.f32 %v290, %v334
    %v369 = vmax.f32 %v292, %v334
    %v370 = vmax.f32 %v183, %v339
    %v371 = vmax.f32 %v185, %v339
    %v372 = vmax.f32 %v296, %v339
    %v373 = vmax.f32 %v298, %v339
    %v374 = vmax.f32 %v189, %v344
    %v375 = vmax.f32 %v191, %v344
    %v376 = vmax.f32 %v302, %v344
    %v377 = vmax.f32 %v304, %v344
    %v378 = vstv %s39
    %vm379 = vcmask 523264
    %v381 = vsel %vm379, %v38, 0
    %383 = vmatprep.subr.mxu0 %v347
    %384 = vmatpush1.msra.mxu0 %v346
    %385 = vmatprep.subr.mxu0 %v351
    %386 = vmatpush1.msra.mxu0 %v350
    %387 = vmatprep.subr.mxu0 %v355
    %388 = vmatpush1.msra.mxu0 %v354
    %389 = vmatprep.subr.mxu0 %v359
    %390 = vmatpush1.msra.mxu0 %v358
    %391 = vmatprep.subr.mxu0 %v363
    %392 = vmatpush1.msra.mxu0 %v362
    %393 = vmatprep.subr.mxu0 %v367
    %394 = vmatpush1.msra.mxu0 %v366
    %395 = vmatprep.subr.mxu0 %v371
    %396 = vmatpush1.msra.mxu0 %v370
    %397 = vmatprep.subr.mxu0 %v375
    %398 = vmatpush1.msra.mxu0 %v374
    %399 = vmatprep.subr.mxu0 0.0
    %400 = vmatpush1.msra.mxu0 0.0
    %401 = vmatprep.subr.mxu0 0.0
    %402 = vmatpush1.msra.mxu0 0.0
    %403 = vmatprep.subr.mxu0 0.0
    %404 = vmatpush1.msra.mxu0 0.0
    %405 = vmatprep.subr.mxu0 0.0
    %406 = vmatpush1.msra.mxu0 0.0
    %407 = vmatprep.subr.mxu0 0.0
    %408 = vmatpush1.msra.mxu0 0.0
    %409 = vmatprep.subr.mxu0 0.0
    %410 = vmatpush1.msra.mxu0 0.0
    %411 = vmatprep.subr.mxu0 0.0
    %412 = vmatpush1.msra.mxu0 0.0
    %413 = vmatprep.subr.mxu0 0.0
    %414 = vmatpush1.msra.mxu0 0.0
    %415 = vmatprep.subr.mxu0 0.0
    %416 = vmatpush1.msra.mxu0 0.0
    %417 = vmatprep.subr.mxu0 0.0
    %418 = vmatpush1.msra.mxu0 0.0
    %419 = vmatprep.subr.mxu0 0.0
    %420 = vmatpush1.msra.mxu0 0.0
    %421 = vmatprep.subr.mxu0 0.0
    %422 = vmatpush1.msra.mxu0 0.0
    %423 = vmatprep.subr.mxu0 0.0
    %424 = vmatpush1.msra.mxu0 0.0
    %425 = vmatprep.subr.mxu0 0.0
    %426 = vmatpush1.msra.mxu0 0.0
    %427 = vmatprep.subr.mxu0 0.0
    %428 = vmatpush1.msra.mxu0 0.0
    %429 = vmatprep.subr.mxu0 0.0
    %430 = vmatpush1.msra.mxu0 0.0
    %431 = vmatprep.subr.mxu0 0.0
    %432 = vmatpush1.msra.mxu0 0.0
    %433 = vmatprep.subr.mxu0 0.0
    %434 = vmatpush1.msra.mxu0 0.0
    %435 = vmatprep.subr.mxu0 0.0
    %436 = vmatpush1.msra.mxu0 0.0
    %437 = vmatprep.subr.mxu0 0.0
    %438 = vmatpush1.msra.mxu0 0.0
    %439 = vmatprep.subr.mxu0 0.0
    %440 = vmatpush1.msra.mxu0 0.0
    %441 = vmatprep.subr.mxu0 0.0
    %442 = vmatpush1.msra.mxu0 0.0
    %443 = vmatprep.subr.mxu0 0.0
    %444 = vmatpush1.msra.mxu0 0.0
    %445 = vmatprep.subr.mxu0 0.0
    %446 = vmatpush1.msra.mxu0 0.0
    %447 = vmatprep.mubr.f32.mxu0 0.0
    %448 = vmatmul.mubr.f32.gmra.mrb[0].mxu0 %v381
    %v449 = vpop.f32.mrb[0].mxu0
    %v450 = vadd.f32 %v378, %v449
    %v451 = vpop.f32.mrb[0].mxu0
    %v452 = vadd.f32 %v378, %v451
    %453 = vdwg.mxu0
    %454 = vmatprep.subr.mxu0 %v349
    %455 = vmatpush1.msra.mxu0 %v348
    %456 = vmatprep.subr.mxu0 %v353
    %457 = vmatpush1.msra.mxu0 %v352
    %458 = vmatprep.subr.mxu0 %v357
    %459 = vmatpush1.msra.mxu0 %v356
    %460 = vmatprep.subr.mxu0 %v361
    %461 = vmatpush1.msra.mxu0 %v360
    %462 = vmatprep.subr.mxu0 %v365
    %463 = vmatpush1.msra.mxu0 %v364
    %464 = vmatprep.subr.mxu0 %v369
    %465 = vmatpush1.msra.mxu0 %v368
    %466 = vmatprep.subr.mxu0 %v373
    %467 = vmatpush1.msra.mxu0 %v372
    %468 = vmatprep.subr.mxu0 %v377
    %469 = vmatpush1.msra.mxu0 %v376
    %470 = vmatprep.subr.mxu0 0.0
    %471 = vmatpush1.msra.mxu0 0.0
    %472 = vmatprep.subr.mxu0 0.0
    %473 = vmatpush1.msra.mxu0 0.0
    %474 = vmatprep.subr.mxu0 0.0
    %475 = vmatpush1.msra.mxu0 0.0
    %476 = vmatprep.subr.mxu0 0.0
    %477 = vmatpush1.msra.mxu0 0.0
    %478 = vmatprep.subr.mxu0 0.0
    %479 = vmatpush1.msra.mxu0 0.0
    %480 = vmatprep.subr.mxu0 0.0
    %481 = vmatpush1.msra.mxu0 0.0
    %482 = vmatprep.subr.mxu0 0.0
    %483 = vmatpush1.msra.mxu0 0.0
    %484 = vmatprep.subr.mxu0 0.0
    %485 = vmatpush1.msra.mxu0 0.0
    %486 = vmatprep.subr.mxu0 0.0
    %487 = vmatpush1.msra.mxu0 0.0
    %488 = vmatprep.subr.mxu0 0.0
    %489 = vmatpush1.msra.mxu0 0.0
    %490 = vmatprep.subr.mxu0 0.0
    %491 = vmatpush1.msra.mxu0 0.0
    %492 = vmatprep.subr.mxu0 0.0
    %493 = vmatpush1.msra.mxu0 0.0
    %494 = vmatprep.subr.mxu0 0.0
    %495 = vmatpush1.msra.mxu0 0.0
    %496 = vmatprep.subr.mxu0 0.0
    %497 = vmatpush1.msra.mxu0 0.0
    %498 = vmatprep.subr.mxu0 0.0
    %499 = vmatpush1.msra.mxu0 0.0
    %500 = vmatprep.subr.mxu0 0.0
    %501 = vmatpush1.msra.mxu0 0.0
    %502 = vmatprep.subr.mxu0 0.0
    %503 = vmatpush1.msra.mxu0 0.0
    %504 = vmatprep.subr.mxu0 0.0
    %505 = vmatpush1.msra.mxu0 0.0
    %506 = vmatprep.subr.mxu0 0.0
    %507 = vmatpush1.msra.mxu0 0.0
    %508 = vmatprep.subr.mxu0 0.0
    %509 = vmatpush1.msra.mxu0 0.0
    %510 = vmatprep.subr.mxu0 0.0
    %511 = vmatpush1.msra.mxu0 0.0
    %512 = vmatprep.subr.mxu0 0.0
    %513 = vmatpush1.msra.mxu0 0.0
    %514 = vmatprep.subr.mxu0 0.0
    %515 = vmatpush1.msra.mxu0 0.0
    %516 = vmatprep.subr.mxu0 0.0
    %517 = vmatpush1.msra.mxu0 0.0
    %518 = vmatprep.mubr.f32.mxu0 0.0
    %519 = vmatmul.mubr.f32.gmra.mrb[0].mxu0 %v381
    %v520 = vpop.f32.mrb[0].mxu0
    %v521 = vadd.f32 %v378, %v520
    %v522 = vpop.f32.mrb[0].mxu0
    %v523 = vadd.f32 %v378, %v522
    %524 = vdwg.mxu0
    %v529 = vcombine.low %v450, %v452
    %v530 = vcombine.low %v521, %v523
    %v532 = vunpack.c.l.s4 1966171168
    %v533 = vunpack.c.0.s8 %v532
    %v534 = vlaneseq
    %v535 = vshrl.u32 %v534, 7
    %v536 = vsub.s32 %v533, %v535
    %v537 = vrot.slane %v529, %v536
    %v539 = vunpack.c.l.s4 1966171168
    %v540 = vunpack.c.0.s8 %v539
    %v541 = vlaneseq
    %v542 = vshrl.u32 %v541, 7
    %v543 = vsub.s32 %v540, %v542
    %v544 = vrot.slane %v530, %v543
    %v545 = vcombine.low %v537, %v544
    %v547 = vunpack.c.l.s4 1966171168
    %v548 = vunpack.c.0.s8 %v547
    %v549 = vlaneseq
    %v550 = vshrl.u32 %v549, 7
    %v551 = vsub.s32 %v548, %v550
    %v552 = vrot.slane %v545, %v551
    %v554 = vlaneseq
    %vm555 = vcmp.ge.s32.totalorder %v554, 0
    %vm556 = vcmp.lt.s32.totalorder %v554, 512
    %vm557 = vmand %vm555, %vm556
    %558 = vst.msk [vmem:[#allocation3] sm:$0xf] %vm557, %v552
    // Predicated region
    $region22: #{tpu_custom_call.1} parent=1 // pred_check
      _
    $region23: #{tpu_custom_call.1} parent=1 // pred_check_branch
      %560 = sbr.rel (0) target = $region25
    $region24: #{tpu_custom_call.1} parent=1 // pred_region
      %s562 = ssub.s32 64, 64
      %563 = vsyncadd [#allocation4], %s562
      %s565 = sshll.u32 [#allocation3], 4
      %s566 = int_to_ptr.vmem [resolvable:$true] %s565
      %568 = dma.vmem_to_hbm [thread:$0]  %s566, 64, %s5, [#allocation4]
    $region25: #{tpu_custom_call.1} parent=1 // pred_fallthru
      _
    // Predicated region
    $region26: #{tpu_custom_call.1} parent=1 // pred_check
      _
    $region27: #{tpu_custom_call.1} parent=1 // pred_check_branch
      %570 = sbr.rel (0) target = $region29
    $region28: #{tpu_custom_call.1} parent=1 // pred_region
      %571 = dma.done [#allocation4], 64
    $region29: #{tpu_custom_call.1} parent=1 // pred_fallthru
      _
    %572 = vsyncpa [#allocation4], 1

</llo_original>
